<compile_context>
chip_gen: v5e
topology: v5e:2x2
jax: 0.10.0
libtpu: 0.0.40
codegen_flags: <defaults>
</compile_context>

<pallas_src>
import jax
import jax.numpy as jnp
from jax.experimental import pallas as pl
from jax.experimental.pallas import tpu as pltpu


def _round_up(x, m):
    return (x + m - 1) // m * m


# -----------------------------------------------------------------------------
# Pallas kernel: fused 5-layer MLP in the transposed (features, rows) layout
# -----------------------------------------------------------------------------
def _rti_decoder_kernel(xT_ref, ldT_ref,
                        w1x_ref, w1l_ref, b1_ref,
                        w2_ref, b2_ref,
                        w3_ref, b3_ref,
                        w4_ref, b4_ref,
                        w5_ref, b5_ref,
                        out_ref):
    T = out_ref.shape[-1]                        # rows in this tile (lane axis)

    def fma_accum(acc, w, hT):
        # acc: (O, T), w: (O, K), hT: (K, T)  ->  acc + W @ hT
        # Unrolled lane-dense VPU broadcast-FMAs (K <= 10); the weight columns
        # are tiny loop-invariant broadcasts, rows stay on the 128-lane axis.
        for k in range(w.shape[1]):
            acc = acc + w[:, k:k + 1] * hT[k:k + 1, :]
        return acc

    def dense(hT, w_ref, b_ref, relu):
        w = w_ref[...]
        acc = jnp.broadcast_to(b_ref[...], (w.shape[0], T))   # bias hoisted once
        acc = fma_accum(acc, w, hT)
        return jnp.maximum(acc, 0.0) if relu else acc

    xT = xT_ref[...].astype(jnp.float32)         # (latent, T)
    ldT = ldT_ref[...].astype(jnp.float32)       # (2, T)

    # Layer 1 with the concat fused in:  W1 @ [x; ld] = W1x @ x + W1l @ ld
    h = jnp.broadcast_to(b1_ref[...], (w1x_ref.shape[0], T))
    h = fma_accum(h, w1x_ref[...], xT)
    h = fma_accum(h, w1l_ref[...], ldT)
    h = jnp.maximum(h, 0.0)                      # act_fn()

    h = dense(h, w2_ref, b2_ref, relu=True)
    h = dense(h, w3_ref, b3_ref, relu=True)
    h = dense(h, w4_ref, b4_ref, relu=True)
    y = dense(h, w5_ref, b5_ref, relu=False)     # (3, T)

    out_ref[...] = y.astype(out_ref.dtype)       # lane-dense store


# -----------------------------------------------------------------------------
# Wrapper: layout plumbing + pallas_call with a row-tiled parallel grid
# -----------------------------------------------------------------------------
def rti_decoder_forward(x, light_direction, params, *, row_tile=8192):
    """x: (B, N, latent_dim), light_direction: (B, N, 2) -> (B, N//4, 4, 3)."""
    w1, b1, w2, b2, w3, b3, w4, b4, w5, b5 = params
    B, N, L = x.shape
    C = w1.shape[0]
    # The PyTorch reshape(B, -1, 4, 4) followed by Linear(4, .) is only
    # consistent if the first Linear produces exactly 4 channels.
    assert C == 4, f"input_channels must be 4 for the reshape semantics, got {C}"
    assert N % 4 == 0, "flattened sample count must be a multiple of 4"
    assert light_direction.shape == (B, N, 2)
    assert w1.shape == (C, L + 2)

    R = B * N
    # Rows go on the 128-lane axis; tile the row axis so BlockSpec pipelines
    # the DMAs.  Per-buffer VMEM at tile=8192: ~(10+2+3)*8192*4B ~= 0.5 MiB.
    tile = _round_up(min(row_tile, _round_up(R, 128)), 128)
    r_pad = _round_up(R, tile)

    # Layout plumbing (not compute): present lane-dense transposed slabs.
    # Callers that control their own layout can pass (F, R) arrays directly.
    xT = jnp.pad(x.reshape(R, L).astype(jnp.float32),
                 ((0, r_pad - R), (0, 0))).T                   # (L, r_pad)
    ldT = jnp.pad(light_direction.reshape(R, 2).astype(jnp.float32),
                  ((0, r_pad - R), (0, 0))).T                  # (2, r_pad)

    args = (xT, ldT,
            w1[:, :L], w1[:, L:], b1.reshape(-1, 1),
            w2, b2.reshape(-1, 1),
            w3, b3.reshape(-1, 1),
            w4, b4.reshape(-1, 1),
            w5, b5.reshape(-1, 1))

    def tile_spec(nfeat):
        return pl.BlockSpec((nfeat, tile), lambda i: (0, i))

    def resident_spec(shape):
        return pl.BlockSpec(shape, lambda i: (0, 0))           # VMEM-resident params

    in_specs = ([tile_spec(L), tile_spec(2)]
                + [resident_spec(a.shape) for a in args[2:]])

    out = pl.pallas_call(
        _rti_decoder_kernel,
        grid=(r_pad // tile,),
        in_specs=in_specs,
        out_specs=pl.BlockSpec((3, tile), lambda i: (0, i)),
        out_shape=jax.ShapeDtypeStruct((3, r_pad), jnp.float32),
        compiler_params=pltpu.CompilerParams(
            dimension_semantics=("parallel",),   # shard row tiles across TCs on v7x
            vmem_limit_bytes=32 * 1024 * 1024,
        ),
    )(*args)

    # (3, R) -> (R, 3) -> (B, N//4, 4, 3): cheap wrapper-side layout plumbing.
    return out[:, :R].T.reshape(B, N // 4, 4, 3)


# -----------------------------------------------------------------------------
# Deterministic parameter construction (PyTorch nn.Linear layout: W (out,in))
# -----------------------------------------------------------------------------
def make_params(key, input_channels, latent_dim):
    dims = [
        (latent_dim + 2, input_channels),   # self.linear[0]
        (input_channels, input_channels),   # self.net[0]
        (input_channels, input_channels),   # self.net[2]
        (input_channels, input_channels),   # self.net[4]
        (input_channels, 3),                # self.net[6]
    ]
    params = []
    for fan_in, fan_out in dims:
        key, kw, kb = jax.random.split(key, 3)
        bound = 1.0 / float(fan_in) ** 0.5
        w = jax.random.uniform(kw, (fan_out, fan_in), jnp.float32, -bound, bound)
        b = jax.random.uniform(kb, (fan_out,), jnp.float32, -bound, bound)
        params += [w, b]
    return tuple(params)


def reference_forward(x, light_direction, params):
    """Pure-JAX reference mirroring the PyTorch module exactly."""
    w1, b1, w2, b2, w3, b3, w4, b4, w5, b5 = params
    h = jnp.concatenate([x, light_direction], axis=-1)
    h = jnp.maximum(h @ w1.T + b1, 0.0)          # (B, N, 4)
    h = h.reshape(h.shape[0], -1, 4, 4)          # (B, N//4, 4, 4)
    h = jnp.maximum(h @ w2.T + b2, 0.0)
    h = jnp.maximum(h @ w3.T + b3, 0.0)
    h = jnp.maximum(h @ w4.T + b4, 0.0)
    return h @ w5.T + b5                         # (B, N//4, 4, 3)


if __name__ == "__main__":
    INPUT_CHANNELS = 4        # required by reshape(B, -1, 4, 4) + Linear(4, .)
    LATENT_DIM = 8
    B, N = 2, 16              # N must be a multiple of 4

    key = jax.random.PRNGKey(0)
    kx, kl, kp = jax.random.split(key, 3)
    x = jax.random.normal(kx, (B, N, LATENT_DIM), jnp.float32)
    light_direction = jax.random.normal(kl, (B, N, 2), jnp.float32)
    params = make_params(kp, INPUT_CHANNELS, LATENT_DIM)

    y = rti_decoder_forward(x, light_direction, params)
    y = jax.block_until_ready(y)

    y_ref = reference_forward(x, light_direction, params)
    assert y.shape == (B, N // 4, 4, 3), y.shape
    assert jnp.allclose(y, y_ref, atol=1e-5, rtol=1e-5), "mismatch vs. reference"

    print("KERNEL_OK")
</pallas_src>

<mosaic_0001>
module attributes {stable_mosaic.version = 11 : i64} {
  func.func @_rti_decoder_kernel(%arg0: i32, %arg1: memref<8x128xf32, #tpu.memory_space<vmem>>, %arg2: memref<2x128xf32, #tpu.memory_space<vmem>>, %arg3: memref<4x8xf32, #tpu.memory_space<vmem>>, %arg4: memref<4x2xf32, #tpu.memory_space<vmem>>, %arg5: memref<4x1xf32, #tpu.memory_space<vmem>>, %arg6: memref<4x4xf32, #tpu.memory_space<vmem>>, %arg7: memref<4x1xf32, #tpu.memory_space<vmem>>, %arg8: memref<4x4xf32, #tpu.memory_space<vmem>>, %arg9: memref<4x1xf32, #tpu.memory_space<vmem>>, %arg10: memref<4x4xf32, #tpu.memory_space<vmem>>, %arg11: memref<4x1xf32, #tpu.memory_space<vmem>>, %arg12: memref<3x4xf32, #tpu.memory_space<vmem>>, %arg13: memref<3x1xf32, #tpu.memory_space<vmem>>, %arg14: memref<3x128xf32, #tpu.memory_space<vmem>>) attributes {dimension_semantics = [#tpu.dimension_semantics<parallel>], iteration_bounds = array<i64: 1>, scalar_prefetch = 0 : i64, scratch_operands = 0 : i64, tpu.core_type = #tpu.core_type<tc>, window_params = [{transform_indices = @transform_0, window_bounds = array<i64: 8, 128>}, {transform_indices = @transform_1, window_bounds = array<i64: 2, 128>}, {pipeline_mode = #tpu.pipeline_mode<synchronous>, transform_indices = @transform_2, window_bounds = array<i64: 4, 8>}, {pipeline_mode = #tpu.pipeline_mode<synchronous>, transform_indices = @transform_3, window_bounds = array<i64: 4, 2>}, {pipeline_mode = #tpu.pipeline_mode<synchronous>, transform_indices = @transform_4, window_bounds = array<i64: 4, 1>}, {pipeline_mode = #tpu.pipeline_mode<synchronous>, transform_indices = @transform_5, window_bounds = array<i64: 4, 4>}, {pipeline_mode = #tpu.pipeline_mode<synchronous>, transform_indices = @transform_6, window_bounds = array<i64: 4, 1>}, {pipeline_mode = #tpu.pipeline_mode<synchronous>, transform_indices = @transform_7, window_bounds = array<i64: 4, 4>}, {pipeline_mode = #tpu.pipeline_mode<synchronous>, transform_indices = @transform_8, window_bounds = array<i64: 4, 1>}, {pipeline_mode = #tpu.pipeline_mode<synchronous>, transform_indices = @transform_9, window_bounds = array<i64: 4, 4>}, {pipeline_mode = #tpu.pipeline_mode<synchronous>, transform_indices = @transform_10, window_bounds = array<i64: 4, 1>}, {pipeline_mode = #tpu.pipeline_mode<synchronous>, transform_indices = @transform_11, window_bounds = array<i64: 3, 4>}, {pipeline_mode = #tpu.pipeline_mode<synchronous>, transform_indices = @transform_12, window_bounds = array<i64: 3, 1>}, {transform_indices = @transform_13, window_bounds = array<i64: 3, 128>}]} {
    %c0 = arith.constant 0 : index
    %c0_0 = arith.constant 0 : index
    %0 = vector.load %arg1[%c0, %c0_0] : memref<8x128xf32, #tpu.memory_space<vmem>>, vector<8x128xf32>
    %c0_1 = arith.constant 0 : index
    %c0_2 = arith.constant 0 : index
    %1 = vector.load %arg2[%c0_1, %c0_2] : memref<2x128xf32, #tpu.memory_space<vmem>>, vector<2x128xf32>
    %c0_3 = arith.constant 0 : index
    %c0_4 = arith.constant 0 : index
    %2 = vector.load %arg5[%c0_3, %c0_4] : memref<4x1xf32, #tpu.memory_space<vmem>>, vector<4x1xf32>
    %3 = vector.shape_cast %2 : vector<4x1xf32> to vector<4x1xf32>
    %4 = vector.broadcast %3 : vector<4x1xf32> to vector<4x128xf32>
    %c0_5 = arith.constant 0 : index
    %c0_6 = arith.constant 0 : index
    %5 = vector.load %arg3[%c0_5, %c0_6] : memref<4x8xf32, #tpu.memory_space<vmem>>, vector<4x8xf32>
    %6 = vector.extract_strided_slice %5 {offsets = [0, 0], sizes = [4, 1], strides = [1, 1]} : vector<4x8xf32> to vector<4x1xf32>
    %7 = vector.extract_strided_slice %0 {offsets = [0, 0], sizes = [1, 128], strides = [1, 1]} : vector<8x128xf32> to vector<1x128xf32>
    %8 = vector.broadcast %6 : vector<4x1xf32> to vector<4x128xf32>
    %9 = vector.broadcast %7 : vector<1x128xf32> to vector<4x128xf32>
    %10 = arith.mulf %8, %9 : vector<4x128xf32>
    %11 = arith.addf %4, %10 : vector<4x128xf32>
    %12 = vector.extract_strided_slice %5 {offsets = [0, 1], sizes = [4, 1], strides = [1, 1]} : vector<4x8xf32> to vector<4x1xf32>
    %13 = vector.extract_strided_slice %0 {offsets = [1, 0], sizes = [1, 128], strides = [1, 1]} : vector<8x128xf32> to vector<1x128xf32>
    %14 = vector.broadcast %12 : vector<4x1xf32> to vector<4x128xf32>
    %15 = vector.broadcast %13 : vector<1x128xf32> to vector<4x128xf32>
    %16 = arith.mulf %14, %15 : vector<4x128xf32>
    %17 = arith.addf %11, %16 : vector<4x128xf32>
    %18 = vector.extract_strided_slice %5 {offsets = [0, 2], sizes = [4, 1], strides = [1, 1]} : vector<4x8xf32> to vector<4x1xf32>
    %19 = vector.extract_strided_slice %0 {offsets = [2, 0], sizes = [1, 128], strides = [1, 1]} : vector<8x128xf32> to vector<1x128xf32>
    %20 = vector.broadcast %18 : vector<4x1xf32> to vector<4x128xf32>
    %21 = vector.broadcast %19 : vector<1x128xf32> to vector<4x128xf32>
    %22 = arith.mulf %20, %21 : vector<4x128xf32>
    %23 = arith.addf %17, %22 : vector<4x128xf32>
    %24 = vector.extract_strided_slice %5 {offsets = [0, 3], sizes = [4, 1], strides = [1, 1]} : vector<4x8xf32> to vector<4x1xf32>
    %25 = vector.extract_strided_slice %0 {offsets = [3, 0], sizes = [1, 128], strides = [1, 1]} : vector<8x128xf32> to vector<1x128xf32>
    %26 = vector.broadcast %24 : vector<4x1xf32> to vector<4x128xf32>
    %27 = vector.broadcast %25 : vector<1x128xf32> to vector<4x128xf32>
    %28 = arith.mulf %26, %27 : vector<4x128xf32>
    %29 = arith.addf %23, %28 : vector<4x128xf32>
    %30 = vector.extract_strided_slice %5 {offsets = [0, 4], sizes = [4, 1], strides = [1, 1]} : vector<4x8xf32> to vector<4x1xf32>
    %31 = vector.extract_strided_slice %0 {offsets = [4, 0], sizes = [1, 128], strides = [1, 1]} : vector<8x128xf32> to vector<1x128xf32>
    %32 = vector.broadcast %30 : vector<4x1xf32> to vector<4x128xf32>
    %33 = vector.broadcast %31 : vector<1x128xf32> to vector<4x128xf32>
    %34 = arith.mulf %32, %33 : vector<4x128xf32>
    %35 = arith.addf %29, %34 : vector<4x128xf32>
    %36 = vector.extract_strided_slice %5 {offsets = [0, 5], sizes = [4, 1], strides = [1, 1]} : vector<4x8xf32> to vector<4x1xf32>
    %37 = vector.extract_strided_slice %0 {offsets = [5, 0], sizes = [1, 128], strides = [1, 1]} : vector<8x128xf32> to vector<1x128xf32>
    %38 = vector.broadcast %36 : vector<4x1xf32> to vector<4x128xf32>
    %39 = vector.broadcast %37 : vector<1x128xf32> to vector<4x128xf32>
    %40 = arith.mulf %38, %39 : vector<4x128xf32>
    %41 = arith.addf %35, %40 : vector<4x128xf32>
    %42 = vector.extract_strided_slice %5 {offsets = [0, 6], sizes = [4, 1], strides = [1, 1]} : vector<4x8xf32> to vector<4x1xf32>
    %43 = vector.extract_strided_slice %0 {offsets = [6, 0], sizes = [1, 128], strides = [1, 1]} : vector<8x128xf32> to vector<1x128xf32>
    %44 = vector.broadcast %42 : vector<4x1xf32> to vector<4x128xf32>
    %45 = vector.broadcast %43 : vector<1x128xf32> to vector<4x128xf32>
    %46 = arith.mulf %44, %45 : vector<4x128xf32>
    %47 = arith.addf %41, %46 : vector<4x128xf32>
    %48 = vector.extract_strided_slice %5 {offsets = [0, 7], sizes = [4, 1], strides = [1, 1]} : vector<4x8xf32> to vector<4x1xf32>
    %49 = vector.extract_strided_slice %0 {offsets = [7, 0], sizes = [1, 128], strides = [1, 1]} : vector<8x128xf32> to vector<1x128xf32>
    %50 = vector.broadcast %48 : vector<4x1xf32> to vector<4x128xf32>
    %51 = vector.broadcast %49 : vector<1x128xf32> to vector<4x128xf32>
    %52 = arith.mulf %50, %51 : vector<4x128xf32>
    %53 = arith.addf %47, %52 : vector<4x128xf32>
    %c0_7 = arith.constant 0 : index
    %c0_8 = arith.constant 0 : index
    %54 = vector.load %arg4[%c0_7, %c0_8] : memref<4x2xf32, #tpu.memory_space<vmem>>, vector<4x2xf32>
    %55 = vector.extract_strided_slice %54 {offsets = [0, 0], sizes = [4, 1], strides = [1, 1]} : vector<4x2xf32> to vector<4x1xf32>
    %56 = vector.extract_strided_slice %1 {offsets = [0, 0], sizes = [1, 128], strides = [1, 1]} : vector<2x128xf32> to vector<1x128xf32>
    %57 = vector.broadcast %55 : vector<4x1xf32> to vector<4x128xf32>
    %58 = vector.broadcast %56 : vector<1x128xf32> to vector<4x128xf32>
    %59 = arith.mulf %57, %58 : vector<4x128xf32>
    %60 = arith.addf %53, %59 : vector<4x128xf32>
    %61 = vector.extract_strided_slice %54 {offsets = [0, 1], sizes = [4, 1], strides = [1, 1]} : vector<4x2xf32> to vector<4x1xf32>
    %62 = vector.extract_strided_slice %1 {offsets = [1, 0], sizes = [1, 128], strides = [1, 1]} : vector<2x128xf32> to vector<1x128xf32>
    %63 = vector.broadcast %61 : vector<4x1xf32> to vector<4x128xf32>
    %64 = vector.broadcast %62 : vector<1x128xf32> to vector<4x128xf32>
    %65 = arith.mulf %63, %64 : vector<4x128xf32>
    %66 = arith.addf %60, %65 : vector<4x128xf32>
    %cst = arith.constant 0.000000e+00 : f32
    %67 = vector.broadcast %cst : f32 to vector<4x128xf32>
    %68 = arith.maximumf %66, %67 : vector<4x128xf32>
    %c0_9 = arith.constant 0 : index
    %c0_10 = arith.constant 0 : index
    %69 = vector.load %arg6[%c0_9, %c0_10] : memref<4x4xf32, #tpu.memory_space<vmem>>, vector<4x4xf32>
    %c0_11 = arith.constant 0 : index
    %c0_12 = arith.constant 0 : index
    %70 = vector.load %arg7[%c0_11, %c0_12] : memref<4x1xf32, #tpu.memory_space<vmem>>, vector<4x1xf32>
    %71 = vector.shape_cast %70 : vector<4x1xf32> to vector<4x1xf32>
    %72 = vector.broadcast %71 : vector<4x1xf32> to vector<4x128xf32>
    %73 = vector.extract_strided_slice %69 {offsets = [0, 0], sizes = [4, 1], strides = [1, 1]} : vector<4x4xf32> to vector<4x1xf32>
    %74 = vector.extract_strided_slice %68 {offsets = [0, 0], sizes = [1, 128], strides = [1, 1]} : vector<4x128xf32> to vector<1x128xf32>
    %75 = vector.broadcast %73 : vector<4x1xf32> to vector<4x128xf32>
    %76 = vector.broadcast %74 : vector<1x128xf32> to vector<4x128xf32>
    %77 = arith.mulf %75, %76 : vector<4x128xf32>
    %78 = arith.addf %72, %77 : vector<4x128xf32>
    %79 = vector.extract_strided_slice %69 {offsets = [0, 1], sizes = [4, 1], strides = [1, 1]} : vector<4x4xf32> to vector<4x1xf32>
    %80 = vector.extract_strided_slice %68 {offsets = [1, 0], sizes = [1, 128], strides = [1, 1]} : vector<4x128xf32> to vector<1x128xf32>
    %81 = vector.broadcast %79 : vector<4x1xf32> to vector<4x128xf32>
    %82 = vector.broadcast %80 : vector<1x128xf32> to vector<4x128xf32>
    %83 = arith.mulf %81, %82 : vector<4x128xf32>
    %84 = arith.addf %78, %83 : vector<4x128xf32>
    %85 = vector.extract_strided_slice %69 {offsets = [0, 2], sizes = [4, 1], strides = [1, 1]} : vector<4x4xf32> to vector<4x1xf32>
    %86 = vector.extract_strided_slice %68 {offsets = [2, 0], sizes = [1, 128], strides = [1, 1]} : vector<4x128xf32> to vector<1x128xf32>
    %87 = vector.broadcast %85 : vector<4x1xf32> to vector<4x128xf32>
    %88 = vector.broadcast %86 : vector<1x128xf32> to vector<4x128xf32>
    %89 = arith.mulf %87, %88 : vector<4x128xf32>
    %90 = arith.addf %84, %89 : vector<4x128xf32>
    %91 = vector.extract_strided_slice %69 {offsets = [0, 3], sizes = [4, 1], strides = [1, 1]} : vector<4x4xf32> to vector<4x1xf32>
    %92 = vector.extract_strided_slice %68 {offsets = [3, 0], sizes = [1, 128], strides = [1, 1]} : vector<4x128xf32> to vector<1x128xf32>
    %93 = vector.broadcast %91 : vector<4x1xf32> to vector<4x128xf32>
    %94 = vector.broadcast %92 : vector<1x128xf32> to vector<4x128xf32>
    %95 = arith.mulf %93, %94 : vector<4x128xf32>
    %96 = arith.addf %90, %95 : vector<4x128xf32>
    %cst_13 = arith.constant 0.000000e+00 : f32
    %97 = vector.broadcast %cst_13 : f32 to vector<4x128xf32>
    %98 = arith.maximumf %96, %97 : vector<4x128xf32>
    %c0_14 = arith.constant 0 : index
    %c0_15 = arith.constant 0 : index
    %99 = vector.load %arg8[%c0_14, %c0_15] : memref<4x4xf32, #tpu.memory_space<vmem>>, vector<4x4xf32>
    %c0_16 = arith.constant 0 : index
    %c0_17 = arith.constant 0 : index
    %100 = vector.load %arg9[%c0_16, %c0_17] : memref<4x1xf32, #tpu.memory_space<vmem>>, vector<4x1xf32>
    %101 = vector.shape_cast %100 : vector<4x1xf32> to vector<4x1xf32>
    %102 = vector.broadcast %101 : vector<4x1xf32> to vector<4x128xf32>
    %103 = vector.extract_strided_slice %99 {offsets = [0, 0], sizes = [4, 1], strides = [1, 1]} : vector<4x4xf32> to vector<4x1xf32>
    %104 = vector.extract_strided_slice %98 {offsets = [0, 0], sizes = [1, 128], strides = [1, 1]} : vector<4x128xf32> to vector<1x128xf32>
    %105 = vector.broadcast %103 : vector<4x1xf32> to vector<4x128xf32>
    %106 = vector.broadcast %104 : vector<1x128xf32> to vector<4x128xf32>
    %107 = arith.mulf %105, %106 : vector<4x128xf32>
    %108 = arith.addf %102, %107 : vector<4x128xf32>
    %109 = vector.extract_strided_slice %99 {offsets = [0, 1], sizes = [4, 1], strides = [1, 1]} : vector<4x4xf32> to vector<4x1xf32>
    %110 = vector.extract_strided_slice %98 {offsets = [1, 0], sizes = [1, 128], strides = [1, 1]} : vector<4x128xf32> to vector<1x128xf32>
    %111 = vector.broadcast %109 : vector<4x1xf32> to vector<4x128xf32>
    %112 = vector.broadcast %110 : vector<1x128xf32> to vector<4x128xf32>
    %113 = arith.mulf %111, %112 : vector<4x128xf32>
    %114 = arith.addf %108, %113 : vector<4x128xf32>
    %115 = vector.extract_strided_slice %99 {offsets = [0, 2], sizes = [4, 1], strides = [1, 1]} : vector<4x4xf32> to vector<4x1xf32>
    %116 = vector.extract_strided_slice %98 {offsets = [2, 0], sizes = [1, 128], strides = [1, 1]} : vector<4x128xf32> to vector<1x128xf32>
    %117 = vector.broadcast %115 : vector<4x1xf32> to vector<4x128xf32>
    %118 = vector.broadcast %116 : vector<1x128xf32> to vector<4x128xf32>
    %119 = arith.mulf %117, %118 : vector<4x128xf32>
    %120 = arith.addf %114, %119 : vector<4x128xf32>
    %121 = vector.extract_strided_slice %99 {offsets = [0, 3], sizes = [4, 1], strides = [1, 1]} : vector<4x4xf32> to vector<4x1xf32>
    %122 = vector.extract_strided_slice %98 {offsets = [3, 0], sizes = [1, 128], strides = [1, 1]} : vector<4x128xf32> to vector<1x128xf32>
    %123 = vector.broadcast %121 : vector<4x1xf32> to vector<4x128xf32>
    %124 = vector.broadcast %122 : vector<1x128xf32> to vector<4x128xf32>
    %125 = arith.mulf %123, %124 : vector<4x128xf32>
    %126 = arith.addf %120, %125 : vector<4x128xf32>
    %cst_18 = arith.constant 0.000000e+00 : f32
    %127 = vector.broadcast %cst_18 : f32 to vector<4x128xf32>
    %128 = arith.maximumf %126, %127 : vector<4x128xf32>
    %c0_19 = arith.constant 0 : index
    %c0_20 = arith.constant 0 : index
    %129 = vector.load %arg10[%c0_19, %c0_20] : memref<4x4xf32, #tpu.memory_space<vmem>>, vector<4x4xf32>
    %c0_21 = arith.constant 0 : index
    %c0_22 = arith.constant 0 : index
    %130 = vector.load %arg11[%c0_21, %c0_22] : memref<4x1xf32, #tpu.memory_space<vmem>>, vector<4x1xf32>
    %131 = vector.shape_cast %130 : vector<4x1xf32> to vector<4x1xf32>
    %132 = vector.broadcast %131 : vector<4x1xf32> to vector<4x128xf32>
    %133 = vector.extract_strided_slice %129 {offsets = [0, 0], sizes = [4, 1], strides = [1, 1]} : vector<4x4xf32> to vector<4x1xf32>
    %134 = vector.extract_strided_slice %128 {offsets = [0, 0], sizes = [1, 128], strides = [1, 1]} : vector<4x128xf32> to vector<1x128xf32>
    %135 = vector.broadcast %133 : vector<4x1xf32> to vector<4x128xf32>
    %136 = vector.broadcast %134 : vector<1x128xf32> to vector<4x128xf32>
    %137 = arith.mulf %135, %136 : vector<4x128xf32>
    %138 = arith.addf %132, %137 : vector<4x128xf32>
    %139 = vector.extract_strided_slice %129 {offsets = [0, 1], sizes = [4, 1], strides = [1, 1]} : vector<4x4xf32> to vector<4x1xf32>
    %140 = vector.extract_strided_slice %128 {offsets = [1, 0], sizes = [1, 128], strides = [1, 1]} : vector<4x128xf32> to vector<1x128xf32>
    %141 = vector.broadcast %139 : vector<4x1xf32> to vector<4x128xf32>
    %142 = vector.broadcast %140 : vector<1x128xf32> to vector<4x128xf32>
    %143 = arith.mulf %141, %142 : vector<4x128xf32>
    %144 = arith.addf %138, %143 : vector<4x128xf32>
    %145 = vector.extract_strided_slice %129 {offsets = [0, 2], sizes = [4, 1], strides = [1, 1]} : vector<4x4xf32> to vector<4x1xf32>
    %146 = vector.extract_strided_slice %128 {offsets = [2, 0], sizes = [1, 128], strides = [1, 1]} : vector<4x128xf32> to vector<1x128xf32>
    %147 = vector.broadcast %145 : vector<4x1xf32> to vector<4x128xf32>
    %148 = vector.broadcast %146 : vector<1x128xf32> to vector<4x128xf32>
    %149 = arith.mulf %147, %148 : vector<4x128xf32>
    %150 = arith.addf %144, %149 : vector<4x128xf32>
    %151 = vector.extract_strided_slice %129 {offsets = [0, 3], sizes = [4, 1], strides = [1, 1]} : vector<4x4xf32> to vector<4x1xf32>
    %152 = vector.extract_strided_slice %128 {offsets = [3, 0], sizes = [1, 128], strides = [1, 1]} : vector<4x128xf32> to vector<1x128xf32>
    %153 = vector.broadcast %151 : vector<4x1xf32> to vector<4x128xf32>
    %154 = vector.broadcast %152 : vector<1x128xf32> to vector<4x128xf32>
    %155 = arith.mulf %153, %154 : vector<4x128xf32>
    %156 = arith.addf %150, %155 : vector<4x128xf32>
    %cst_23 = arith.constant 0.000000e+00 : f32
    %157 = vector.broadcast %cst_23 : f32 to vector<4x128xf32>
    %158 = arith.maximumf %156, %157 : vector<4x128xf32>
    %c0_24 = arith.constant 0 : index
    %c0_25 = arith.constant 0 : index
    %159 = vector.load %arg12[%c0_24, %c0_25] : memref<3x4xf32, #tpu.memory_space<vmem>>, vector<3x4xf32>
    %c0_26 = arith.constant 0 : index
    %c0_27 = arith.constant 0 : index
    %160 = vector.load %arg13[%c0_26, %c0_27] : memref<3x1xf32, #tpu.memory_space<vmem>>, vector<3x1xf32>
    %161 = vector.shape_cast %160 : vector<3x1xf32> to vector<3x1xf32>
    %162 = vector.broadcast %161 : vector<3x1xf32> to vector<3x128xf32>
    %163 = vector.extract_strided_slice %159 {offsets = [0, 0], sizes = [3, 1], strides = [1, 1]} : vector<3x4xf32> to vector<3x1xf32>
    %164 = vector.extract_strided_slice %158 {offsets = [0, 0], sizes = [1, 128], strides = [1, 1]} : vector<4x128xf32> to vector<1x128xf32>
    %165 = vector.broadcast %163 : vector<3x1xf32> to vector<3x128xf32>
    %166 = vector.broadcast %164 : vector<1x128xf32> to vector<3x128xf32>
    %167 = arith.mulf %165, %166 : vector<3x128xf32>
    %168 = arith.addf %162, %167 : vector<3x128xf32>
    %169 = vector.extract_strided_slice %159 {offsets = [0, 1], sizes = [3, 1], strides = [1, 1]} : vector<3x4xf32> to vector<3x1xf32>
    %170 = vector.extract_strided_slice %158 {offsets = [1, 0], sizes = [1, 128], strides = [1, 1]} : vector<4x128xf32> to vector<1x128xf32>
    %171 = vector.broadcast %169 : vector<3x1xf32> to vector<3x128xf32>
    %172 = vector.broadcast %170 : vector<1x128xf32> to vector<3x128xf32>
    %173 = arith.mulf %171, %172 : vector<3x128xf32>
    %174 = arith.addf %168, %173 : vector<3x128xf32>
    %175 = vector.extract_strided_slice %159 {offsets = [0, 2], sizes = [3, 1], strides = [1, 1]} : vector<3x4xf32> to vector<3x1xf32>
    %176 = vector.extract_strided_slice %158 {offsets = [2, 0], sizes = [1, 128], strides = [1, 1]} : vector<4x128xf32> to vector<1x128xf32>
    %177 = vector.broadcast %175 : vector<3x1xf32> to vector<3x128xf32>
    %178 = vector.broadcast %176 : vector<1x128xf32> to vector<3x128xf32>
    %179 = arith.mulf %177, %178 : vector<3x128xf32>
    %180 = arith.addf %174, %179 : vector<3x128xf32>
    %181 = vector.extract_strided_slice %159 {offsets = [0, 3], sizes = [3, 1], strides = [1, 1]} : vector<3x4xf32> to vector<3x1xf32>
    %182 = vector.extract_strided_slice %158 {offsets = [3, 0], sizes = [1, 128], strides = [1, 1]} : vector<4x128xf32> to vector<1x128xf32>
    %183 = vector.broadcast %181 : vector<3x1xf32> to vector<3x128xf32>
    %184 = vector.broadcast %182 : vector<1x128xf32> to vector<3x128xf32>
    %185 = arith.mulf %183, %184 : vector<3x128xf32>
    %186 = arith.addf %180, %185 : vector<3x128xf32>
    %c0_28 = arith.constant 0 : index
    %c0_29 = arith.constant 0 : index
    %187 = vector.load %arg14[%c0_28, %c0_29] : memref<3x128xf32, #tpu.memory_space<vmem>>, vector<3x128xf32>
    tpu.vector_store %arg14[%c0_28, %c0_29], %186 {strides = array<i32>} : memref<3x128xf32, #tpu.memory_space<vmem>>, vector<3x128xf32>,
    return
  }
  func.func @transform_0(%arg0: i32) -> (i32, i32) {
    %c0_i32 = arith.constant 0 : i32
    %c0_i32_0 = arith.constant 0 : i32
    return %c0_i32, %arg0 : i32, i32
  }
  func.func @transform_1(%arg0: i32) -> (i32, i32) {
    %c0_i32 = arith.constant 0 : i32
    %c0_i32_0 = arith.constant 0 : i32
    return %c0_i32, %arg0 : i32, i32
  }
  func.func @transform_2(%arg0: i32) -> (i32, i32) {
    %c0_i32 = arith.constant 0 : i32
    %c0_i32_0 = arith.constant 0 : i32
    %c0_i32_1 = arith.constant 0 : i32
    return %c0_i32, %c0_i32_0 : i32, i32
  }
  func.func @transform_3(%arg0: i32) -> (i32, i32) {
    %c0_i32 = arith.constant 0 : i32
    %c0_i32_0 = arith.constant 0 : i32
    %c0_i32_1 = arith.constant 0 : i32
    return %c0_i32, %c0_i32_0 : i32, i32
  }
  func.func @transform_4(%arg0: i32) -> (i32, i32) {
    %c0_i32 = arith.constant 0 : i32
    %c0_i32_0 = arith.constant 0 : i32
    %c0_i32_1 = arith.constant 0 : i32
    return %c0_i32, %c0_i32_0 : i32, i32
  }
  func.func @transform_5(%arg0: i32) -> (i32, i32) {
    %c0_i32 = arith.constant 0 : i32
    %c0_i32_0 = arith.constant 0 : i32
    %c0_i32_1 = arith.constant 0 : i32
    return %c0_i32, %c0_i32_0 : i32, i32
  }
  func.func @transform_6(%arg0: i32) -> (i32, i32) {
    %c0_i32 = arith.constant 0 : i32
    %c0_i32_0 = arith.constant 0 : i32
    %c0_i32_1 = arith.constant 0 : i32
    return %c0_i32, %c0_i32_0 : i32, i32
  }
  func.func @transform_7(%arg0: i32) -> (i32, i32) {
    %c0_i32 = arith.constant 0 : i32
    %c0_i32_0 = arith.constant 0 : i32
    %c0_i32_1 = arith.constant 0 : i32
    return %c0_i32, %c0_i32_0 : i32, i32
  }
  func.func @transform_8(%arg0: i32) -> (i32, i32) {
    %c0_i32 = arith.constant 0 : i32
    %c0_i32_0 = arith.constant 0 : i32
    %c0_i32_1 = arith.constant 0 : i32
    return %c0_i32, %c0_i32_0 : i32, i32
  }
  func.func @transform_9(%arg0: i32) -> (i32, i32) {
    %c0_i32 = arith.constant 0 : i32
    %c0_i32_0 = arith.constant 0 : i32
    %c0_i32_1 = arith.constant 0 : i32
    return %c0_i32, %c0_i32_0 : i32, i32
  }
  func.func @transform_10(%arg0: i32) -> (i32, i32) {
    %c0_i32 = arith.constant 0 : i32
    %c0_i32_0 = arith.constant 0 : i32
    %c0_i32_1 = arith.constant 0 : i32
    return %c0_i32, %c0_i32_0 : i32, i32
  }
  func.func @transform_11(%arg0: i32) -> (i32, i32) {
    %c0_i32 = arith.constant 0 : i32
    %c0_i32_0 = arith.constant 0 : i32
    %c0_i32_1 = arith.constant 0 : i32
    return %c0_i32, %c0_i32_0 : i32, i32
  }
  func.func @transform_12(%arg0: i32) -> (i32, i32) {
    %c0_i32 = arith.constant 0 : i32
    %c0_i32_0 = arith.constant 0 : i32
    %c0_i32_1 = arith.constant 0 : i32
    return %c0_i32, %c0_i32_0 : i32, i32
  }
  func.func @transform_13(%arg0: i32) -> (i32, i32) {
    %c0_i32 = arith.constant 0 : i32
    %c0_i32_0 = arith.constant 0 : i32
    return %c0_i32, %arg0 : i32, i32
  }
}

</mosaic_0001>

<llo_original>
// kernel: tpu_custom_call.1
$region0: #{tpu_custom_call.1}
  #allocation0 [shape = 'u32[]', space=smem, size = 0x4, offset = 0x4, fixed_abs, tag = 'smem constant byte address 0x4 - core index']
  #allocation1 [shape = 'u32[72,128]{1,0:T(1,128)}', space=vmem, size = 0x9000, scoped, tag = 'internal scratch']
  %s0 = inlined_call_operand.vmem [shape: f32[8,128], index: 0, kind: input, shape index: {}]
  %s1 = inlined_call_operand.vmem [shape: f32[2,128], index: 1, kind: input, shape index: {}]
  %s2 = inlined_call_operand.vmem [shape: f32[4,8], index: 2, kind: input, shape index: {}]
  %s3 = inlined_call_operand.vmem [shape: f32[4,2], index: 3, kind: input, shape index: {}]
  %s4 = inlined_call_operand.vmem [shape: f32[4,1], index: 4, kind: input, shape index: {}]
  %s5 = inlined_call_operand.vmem [shape: f32[4,4], index: 5, kind: input, shape index: {}]
  %s6 = inlined_call_operand.vmem [shape: f32[4,1], index: 6, kind: input, shape index: {}]
  %s7 = inlined_call_operand.vmem [shape: f32[4,4], index: 7, kind: input, shape index: {}]
  %s8 = inlined_call_operand.vmem [shape: f32[4,1], index: 8, kind: input, shape index: {}]
  %s9 = inlined_call_operand.vmem [shape: f32[4,4], index: 9, kind: input, shape index: {}]
  %s10 = inlined_call_operand.vmem [shape: f32[4,1], index: 10, kind: input, shape index: {}]
  %s11 = inlined_call_operand.vmem [shape: f32[3,4], index: 11, kind: input, shape index: {}]
  %s12 = inlined_call_operand.vmem [shape: f32[3,1], index: 12, kind: input, shape index: {}]
  %s13 = inlined_call_operand.hbm [shape: f32[3,128], index: 13, kind: output, shape index: {}]
  %s14 = sld [smem:[#allocation0]]
  $region62: #{tpu_custom_call.1} parent=0
    _
  %s16 = ssub.s32 1, %s14
  %s17 = scalar_select 0, %s16, %s14
  $region1: #{tpu_custom_call.1} parent=0
    #allocation2 [shape = 'u8[2048]{0}', space=vmem, size = 0x800, scoped, tag = 'output window, operand 0, single buffered']
    #allocation3 [shape = 's32[1]{0}', space=sflag, size = 0x4, scoped, tag = 'scoped memory for tpu_custom_call.1']
    %18 = vsyncpa [#allocation3], 0
    // Predicated region
    $region2: #{tpu_custom_call.1} parent=1 // pred_check
      _
    $region3: #{tpu_custom_call.1} parent=1 // pred_check_branch
      %20 = sbr.rel (0) target = $region5
    $region4: #{tpu_custom_call.1} parent=1 // pred_region
      _
    $region5: #{tpu_custom_call.1} parent=1 // pred_fallthru
      _
    // Predicated region
    $region6: #{tpu_custom_call.1} parent=1 // pred_check
      _
    $region7: #{tpu_custom_call.1} parent=1 // pred_check_branch
      %22 = sbr.rel (0) target = $region9
    $region8: #{tpu_custom_call.1} parent=1 // pred_region
      _
    $region9: #{tpu_custom_call.1} parent=1 // pred_fallthru
      _
    // Predicated region
    $region10: #{tpu_custom_call.1} parent=1 // pred_check
      _
    $region11: #{tpu_custom_call.1} parent=1 // pred_check_branch
      %24 = sbr.rel (0) target = $region13
    $region12: #{tpu_custom_call.1} parent=1 // pred_region
      _
    $region13: #{tpu_custom_call.1} parent=1 // pred_fallthru
      _
    // Predicated region
    $region14: #{tpu_custom_call.1} parent=1 // pred_check
      _
    $region15: #{tpu_custom_call.1} parent=1 // pred_check_branch
      %26 = sbr.rel (0) target = $region17
    $region16: #{tpu_custom_call.1} parent=1 // pred_region
      _
    $region17: #{tpu_custom_call.1} parent=1 // pred_fallthru
      _
    // Predicated region
    $region18: #{tpu_custom_call.1} parent=1 // pred_check
      _
    $region19: #{tpu_custom_call.1} parent=1 // pred_check_branch
      %28 = sbr.rel (0) target = $region21
    $region20: #{tpu_custom_call.1} parent=1 // pred_region
      _
    $region21: #{tpu_custom_call.1} parent=1 // pred_fallthru
      _
    // Predicated region
    $region22: #{tpu_custom_call.1} parent=1 // pred_check
      _
    $region23: #{tpu_custom_call.1} parent=1 // pred_check_branch
      %30 = sbr.rel (0) target = $region25
    $region24: #{tpu_custom_call.1} parent=1 // pred_region
      _
    $region25: #{tpu_custom_call.1} parent=1 // pred_fallthru
      _
    // Predicated region
    $region26: #{tpu_custom_call.1} parent=1 // pred_check
      _
    $region27: #{tpu_custom_call.1} parent=1 // pred_check_branch
      %32 = sbr.rel (0) target = $region29
    $region28: #{tpu_custom_call.1} parent=1 // pred_region
      _
    $region29: #{tpu_custom_call.1} parent=1 // pred_fallthru
      _
    // Predicated region
    $region30: #{tpu_custom_call.1} parent=1 // pred_check
      _
    $region31: #{tpu_custom_call.1} parent=1 // pred_check_branch
      %34 = sbr.rel (0) target = $region33
    $region32: #{tpu_custom_call.1} parent=1 // pred_region
      _
    $region33: #{tpu_custom_call.1} parent=1 // pred_fallthru
      _
    // Predicated region
    $region34: #{tpu_custom_call.1} parent=1 // pred_check
      _
    $region35: #{tpu_custom_call.1} parent=1 // pred_check_branch
      %36 = sbr.rel (0) target = $region37
    $region36: #{tpu_custom_call.1} parent=1 // pred_region
      _
    $region37: #{tpu_custom_call.1} parent=1 // pred_fallthru
      _
    // Predicated region
    $region38: #{tpu_custom_call.1} parent=1 // pred_check
      _
    $region39: #{tpu_custom_call.1} parent=1 // pred_check_branch
      %38 = sbr.rel (0) target = $region41
    $region40: #{tpu_custom_call.1} parent=1 // pred_region
      _
    $region41: #{tpu_custom_call.1} parent=1 // pred_fallthru
      _
    // Predicated region
    $region42: #{tpu_custom_call.1} parent=1 // pred_check
      _
    $region43: #{tpu_custom_call.1} parent=1 // pred_check_branch
      %40 = sbr.rel (0) target = $region45
    $region44: #{tpu_custom_call.1} parent=1 // pred_region
      _
    $region45: #{tpu_custom_call.1} parent=1 // pred_fallthru
      _
    // Predicated region
    $region46: #{tpu_custom_call.1} parent=1 // pred_check
      _
    $region47: #{tpu_custom_call.1} parent=1 // pred_check_branch
      %42 = sbr.rel (0) target = $region49
    $region48: #{tpu_custom_call.1} parent=1 // pred_region
      _
    $region49: #{tpu_custom_call.1} parent=1 // pred_fallthru
      _
    // Predicated region
    $region50: #{tpu_custom_call.1} parent=1 // pred_check
      _
    $region51: #{tpu_custom_call.1} parent=1 // pred_check_branch
      %44 = sbr.rel (0) target = $region53
    $region52: #{tpu_custom_call.1} parent=1 // pred_region
      _
    $region53: #{tpu_custom_call.1} parent=1 // pred_fallthru
      _
    %v45 = vld [vmem:[%s0] sm:$0xff]
    %v46 = vld [vmem:[%s1] sm:$0x3]
    %v47 = vld [vmem:[%s4] sm:$0xf]
    %49 = vset.pattern.permute.xlu0 0
    %50 = vperm.xlu0 %49, %v47
    %v51 = vpop.permute.xlu0 %50
    %v53 = vld [vmem:[%s2] sm:$0xf]
    %55 = vset.pattern.permute.xlu0 0
    %56 = vperm.xlu0 %55, %v53
    %v57 = vpop.permute.xlu0 %56
    %v59 = vperm.slane %v45, 0
    %v60 = vmul.f32 %v57, %v59
    %v61 = vadd.f32 %v51, %v60
    %62 = vset.pattern.permute.xlu0 1
    %63 = vperm.xlu0 %62, %v53
    %v64 = vpop.permute.xlu0 %63
    %v66 = vperm.slane %v45, 1
    %v67 = vmul.f32 %v64, %v66
    %v68 = vadd.f32 %v61, %v67
    %69 = vset.pattern.permute.xlu0 2
    %70 = vperm.xlu0 %69, %v53
    %v71 = vpop.permute.xlu0 %70
    %v73 = vperm.slane %v45, 2
    %v74 = vmul.f32 %v71, %v73
    %v75 = vadd.f32 %v68, %v74
    %76 = vset.pattern.permute.xlu0 3
    %77 = vperm.xlu0 %76, %v53
    %v78 = vpop.permute.xlu0 %77
    %v80 = vperm.slane %v45, 3
    %v81 = vmul.f32 %v78, %v80
    %v82 = vadd.f32 %v75, %v81
    %83 = vset.pattern.permute.xlu0 4
    %84 = vperm.xlu0 %83, %v53
    %v85 = vpop.permute.xlu0 %84
    %v87 = vperm.slane %v45, 4
    %v88 = vmul.f32 %v85, %v87
    %v89 = vadd.f32 %v82, %v88
    %90 = vset.pattern.permute.xlu0 5
    %91 = vperm.xlu0 %90, %v53
    %v92 = vpop.permute.xlu0 %91
    %v94 = vperm.slane %v45, 5
    %v95 = vmul.f32 %v92, %v94
    %v96 = vadd.f32 %v89, %v95
    %97 = vset.pattern.permute.xlu0 6
    %98 = vperm.xlu0 %97, %v53
    %v99 = vpop.permute.xlu0 %98
    %v101 = vperm.slane %v45, 6
    %v102 = vmul.f32 %v99, %v101
    %v103 = vadd.f32 %v96, %v102
    %104 = vset.pattern.permute.xlu0 7
    %105 = vperm.xlu0 %104, %v53
    %v106 = vpop.permute.xlu0 %105
    %v108 = vperm.slane %v45, 7
    %v109 = vmul.f32 %v106, %v108
    %v110 = vadd.f32 %v103, %v109
    %v111 = vld [vmem:[%s3] sm:$0xf]
    %113 = vset.pattern.permute.xlu0 0
    %114 = vperm.xlu0 %113, %v111
    %v115 = vpop.permute.xlu0 %114
    %v117 = vperm.slane %v46, 0
    %v118 = vmul.f32 %v115, %v117
    %v119 = vadd.f32 %v110, %v118
    %120 = vset.pattern.permute.xlu0 1
    %121 = vperm.xlu0 %120, %v111
    %v122 = vpop.permute.xlu0 %121
    %v124 = vperm.slane %v46, 1
    %v125 = vmul.f32 %v122, %v124
    %v126 = vadd.f32 %v119, %v125
    %v127 = vmax.f32 %v126, 0.0
    %v128 = vld [vmem:[%s5] sm:$0xf]
    %v129 = vld [vmem:[%s6] sm:$0xf]
    %131 = vset.pattern.permute.xlu0 0
    %132 = vperm.xlu0 %131, %v129
    %v133 = vpop.permute.xlu0 %132
    %136 = vset.pattern.permute.xlu0 0
    %137 = vperm.xlu0 %136, %v128
    %v138 = vpop.permute.xlu0 %137
    %v140 = vperm.slane %v127, 0
    %v141 = vmul.f32 %v138, %v140
    %v142 = vadd.f32 %v133, %v141
    %143 = vset.pattern.permute.xlu0 1
    %144 = vperm.xlu0 %143, %v128
    %v145 = vpop.permute.xlu0 %144
    %v147 = vperm.slane %v127, 1
    %v148 = vmul.f32 %v145, %v147
    %v149 = vadd.f32 %v142, %v148
    %150 = vset.pattern.permute.xlu0 2
    %151 = vperm.xlu0 %150, %v128
    %v152 = vpop.permute.xlu0 %151
    %v154 = vperm.slane %v127, 2
    %v155 = vmul.f32 %v152, %v154
    %v156 = vadd.f32 %v149, %v155
    %157 = vset.pattern.permute.xlu0 3
    %158 = vperm.xlu0 %157, %v128
    %v159 = vpop.permute.xlu0 %158
    %v161 = vperm.slane %v127, 3
    %v162 = vmul.f32 %v159, %v161
    %v163 = vadd.f32 %v156, %v162
    %v164 = vmax.f32 %v163, 0.0
    %v165 = vld [vmem:[%s7] sm:$0xf]
    %v166 = vld [vmem:[%s8] sm:$0xf]
    %168 = vset.pattern.permute.xlu0 0
    %169 = vperm.xlu0 %168, %v166
    %v170 = vpop.permute.xlu0 %169
    %173 = vset.pattern.permute.xlu0 0
    %174 = vperm.xlu0 %173, %v165
    %v175 = vpop.permute.xlu0 %174
    %v177 = vperm.slane %v164, 0
    %v178 = vmul.f32 %v175, %v177
    %v179 = vadd.f32 %v170, %v178
    %180 = vset.pattern.permute.xlu0 1
    %181 = vperm.xlu0 %180, %v165
    %v182 = vpop.permute.xlu0 %181
    %v184 = vperm.slane %v164, 1
    %v185 = vmul.f32 %v182, %v184
    %v186 = vadd.f32 %v179, %v185
    %187 = vset.pattern.permute.xlu0 2
    %188 = vperm.xlu0 %187, %v165
    %v189 = vpop.permute.xlu0 %188
    %v191 = vperm.slane %v164, 2
    %v192 = vmul.f32 %v189, %v191
    %v193 = vadd.f32 %v186, %v192
    %194 = vset.pattern.permute.xlu0 3
    %195 = vperm.xlu0 %194, %v165
    %v196 = vpop.permute.xlu0 %195
    %v198 = vperm.slane %v164, 3
    %v199 = vmul.f32 %v196, %v198
    %v200 = vadd.f32 %v193, %v199
    %v201 = vmax.f32 %v200, 0.0
    %v202 = vld [vmem:[%s9] sm:$0xf]
    %v203 = vld [vmem:[%s10] sm:$0xf]
    %205 = vset.pattern.permute.xlu0 0
    %206 = vperm.xlu0 %205, %v203
    %v207 = vpop.permute.xlu0 %206
    %210 = vset.pattern.permute.xlu0 0
    %211 = vperm.xlu0 %210, %v202
    %v212 = vpop.permute.xlu0 %211
    %v214 = vperm.slane %v201, 0
    %v215 = vmul.f32 %v212, %v214
    %v216 = vadd.f32 %v207, %v215
    %217 = vset.pattern.permute.xlu0 1
    %218 = vperm.xlu0 %217, %v202
    %v219 = vpop.permute.xlu0 %218
    %v221 = vperm.slane %v201, 1
    %v222 = vmul.f32 %v219, %v221
    %v223 = vadd.f32 %v216, %v222
    %224 = vset.pattern.permute.xlu0 2
    %225 = vperm.xlu0 %224, %v202
    %v226 = vpop.permute.xlu0 %225
    %v228 = vperm.slane %v201, 2
    %v229 = vmul.f32 %v226, %v228
    %v230 = vadd.f32 %v223, %v229
    %231 = vset.pattern.permute.xlu0 3
    %232 = vperm.xlu0 %231, %v202
    %v233 = vpop.permute.xlu0 %232
    %v235 = vperm.slane %v201, 3
    %v236 = vmul.f32 %v233, %v235
    %v237 = vadd.f32 %v230, %v236
    %v238 = vmax.f32 %v237, 0.0
    %v239 = vld [vmem:[%s11] sm:$0x7]
    %v240 = vld [vmem:[%s12] sm:$0x7]
    %242 = vset.pattern.permute.xlu0 0
    %243 = vperm.xlu0 %242, %v240
    %v244 = vpop.permute.xlu0 %243
    %247 = vset.pattern.permute.xlu0 0
    %248 = vperm.xlu0 %247, %v239
    %v249 = vpop.permute.xlu0 %248
    %v251 = vperm.slane %v238, 0
    %v252 = vmul.f32 %v249, %v251
    %v253 = vadd.f32 %v244, %v252
    %254 = vset.pattern.permute.xlu0 1
    %255 = vperm.xlu0 %254, %v239
    %v256 = vpop.permute.xlu0 %255
    %v258 = vperm.slane %v238, 1
    %v259 = vmul.f32 %v256, %v258
    %v260 = vadd.f32 %v253, %v259
    %261 = vset.pattern.permute.xlu0 2
    %262 = vperm.xlu0 %261, %v239
    %v263 = vpop.permute.xlu0 %262
    %v265 = vperm.slane %v238, 2
    %v266 = vmul.f32 %v263, %v265
    %v267 = vadd.f32 %v260, %v266
    %268 = vset.pattern.permute.xlu0 3
    %269 = vperm.xlu0 %268, %v239
    %v270 = vpop.permute.xlu0 %269
    %v272 = vperm.slane %v238, 3
    %v273 = vmul.f32 %v270, %v272
    %v274 = vadd.f32 %v267, %v273
    %275 = vst [vmem:[#allocation2] sm:$0x7] %v274
    // Predicated region
    $region54: #{tpu_custom_call.1} parent=1 // pred_check
      _
    $region55: #{tpu_custom_call.1} parent=1 // pred_check_branch
      %277 = sbr.rel (0) target = $region57
    $region56: #{tpu_custom_call.1} parent=1 // pred_region
      %279 = vsyncadd [#allocation3], 0
      %s281 = sshll.u32 [#allocation2], 4
      %s282 = int_to_ptr.vmem [resolvable:$true] %s281
      %s283 = sshll.u32 %s13, 4
      %s284 = int_to_ptr.hbm [resolvable:$true] %s283
      %286 = dma.vmem_to_hbm [thread:$0]  %s282, 64, %s284, [#allocation3]
    $region57: #{tpu_custom_call.1} parent=1 // pred_fallthru
      _
    // Predicated region
    $region58: #{tpu_custom_call.1} parent=1 // pred_check
      _
    $region59: #{tpu_custom_call.1} parent=1 // pred_check_branch
      %288 = sbr.rel (0) target = $region61
    $region60: #{tpu_custom_call.1} parent=1 // pred_region
      %290 = dma.done [#allocation3], 64
    $region61: #{tpu_custom_call.1} parent=1 // pred_fallthru
      _
    %291 = vsyncpa [#allocation3], 1

</llo_original>
